<compile_context>
chip_gen: v7x
topology: tpu7x:2x2x1
jax: 0.10.0
libtpu: 0.0.40
codegen_flags: <defaults>
</compile_context>

<pallas_src>
import functools

import jax
import jax.numpy as jnp
from jax.experimental import pallas as pl
from jax.experimental.pallas import tpu as pltpu

_EPS = 1e-5
_SLOPE = 0.2
_LANE = 128
_SUBLANE = 8


def _round_up(n, m):
    return (n + m - 1) // m * m


def _leaky_relu(x):
    return jnp.where(x > 0, x, _SLOPE * x)


def _bn_fold(h, gamma, beta, n_valid, row_mask):
    """Training-mode BatchNorm1d folded into one scale/shift, single-pass stats.

    h: (B_pad, F) f32. gamma/beta: (1, F) f32. Stats use only the first
    `n_valid` rows (row_mask masks padded rows; None means no padding).
    """
    inv_n = jnp.float32(1.0 / n_valid)
    if row_mask is None:
        s = jnp.sum(h, axis=0, keepdims=True)
        ss = jnp.sum(h * h, axis=0, keepdims=True)
    else:
        hm = h * row_mask
        s = jnp.sum(hm, axis=0, keepdims=True)
        ss = jnp.sum(hm * h, axis=0, keepdims=True)
    mean = s * inv_n
    var = ss * inv_n - mean * mean          # biased batch variance (PyTorch norm)
    scale = gamma * jax.lax.rsqrt(var + _EPS)
    shift = beta - mean * scale
    return h * scale + shift


def ltm_generator_kernel(n_valid, b_pad,
                         x_ref,
                         w1_ref, g1_ref, be1_ref,
                         w2_ref, g2_ref, be2_ref,
                         w3_ref, b3_ref,
                         w4_ref, b4_ref,
                         o_ref):
    x = x_ref[...]                                   # bf16 (B_pad, size_pad)

    if n_valid != b_pad:
        row_ids = jax.lax.broadcasted_iota(jnp.int32, (b_pad, 1), 0)
        row_mask = (row_ids < n_valid).astype(jnp.float32)
    else:
        row_mask = None

    # Layer 1: Linear(size, 128) -> BN(128) -> LeakyReLU(0.2)
    # (Linear bias omitted: exactly cancelled by BN mean subtraction.)
    h = jnp.dot(x, w1_ref[...], preferred_element_type=jnp.float32)
    h = _leaky_relu(_bn_fold(h, g1_ref[...], be1_ref[...], n_valid, row_mask))

    # Layer 2: Linear(128, 256) -> BN(256) -> LeakyReLU(0.2)
    h = jnp.dot(h.astype(jnp.bfloat16), w2_ref[...],
                preferred_element_type=jnp.float32)
    h = _leaky_relu(_bn_fold(h, g2_ref[...], be2_ref[...], n_valid, row_mask))

    # Layer 3: Linear(256, 512) + bias -> LeakyReLU(0.2)
    h = jnp.dot(h.astype(jnp.bfloat16), w3_ref[...],
                preferred_element_type=jnp.float32)
    h = _leaky_relu(h + b3_ref[...])

    # Layer 4: Linear(512, output_pad) + bias  (lane-dense padded output)
    h = jnp.dot(h.astype(jnp.bfloat16), w4_ref[...],
                preferred_element_type=jnp.float32)
    o_ref[...] = (h + b4_ref[...]).astype(o_ref.dtype)


def ltm_generator(x, params):
    """x: (B, size) float32. params: dict of f32 weights (see init_params)."""
    B, size = x.shape
    out_dim = params["w4"].shape[1]

    b_pad = _round_up(max(B, _SUBLANE), _SUBLANE)
    size_pad = _round_up(size, _LANE)
    out_pad = _round_up(out_dim, _LANE)

    # bf16 matmul operands, zero-padded to lane-dense shapes.
    x_p = jnp.zeros((b_pad, size_pad), jnp.bfloat16)
    x_p = x_p.at[:B, :size].set(x.astype(jnp.bfloat16))
    w1 = jnp.zeros((size_pad, 128), jnp.bfloat16)
    w1 = w1.at[:size, :].set(params["w1"].astype(jnp.bfloat16))
    w2 = params["w2"].astype(jnp.bfloat16)
    w3 = params["w3"].astype(jnp.bfloat16)
    w4 = jnp.zeros((512, out_pad), jnp.bfloat16)
    w4 = w4.at[:, :out_dim].set(params["w4"].astype(jnp.bfloat16))
    b4 = jnp.zeros((1, out_pad), jnp.float32)
    b4 = b4.at[:, :out_dim].set(params["b4"])

    args = (
        x_p,
        w1, params["g1"], params["be1"],
        w2, params["g2"], params["be2"],
        w3, params["b3"],
        w4, b4,
    )

    flops = 2 * b_pad * (size_pad * 128 + 128 * 256 + 256 * 512 + 512 * out_pad)
    bytes_accessed = (sum(int(a.size) * a.dtype.itemsize for a in args)
                      + b_pad * out_pad * 4)
    cost = pl.CostEstimate(flops=flops,
                           transcendentals=128 + 256,     # rsqrt per BN feature
                           bytes_accessed=bytes_accessed)

    vmem = pl.BlockSpec(memory_space=pltpu.MemorySpace.VMEM)
    kernel = functools.partial(ltm_generator_kernel, B, b_pad)

    out = pl.pallas_call(
        kernel,
        out_shape=jax.ShapeDtypeStruct((b_pad, out_pad), jnp.float32),
        in_specs=[vmem] * len(args),
        out_specs=vmem,
        compiler_params=pltpu.CompilerParams(vmem_limit_bytes=32 * 1024 * 1024),
        cost_estimate=cost,
    )(*args)
    return out[:B, :out_dim]


def init_params(key, size, output):
    """Deterministic synthetic init (shapes match nn.Linear / BatchNorm1d)."""
    ks = jax.random.split(key, 8)

    def lin(kw, kb, fan_in, fan_out):
        bound = 1.0 / jnp.sqrt(fan_in)
        w = jax.random.uniform(kw, (fan_in, fan_out), jnp.float32, -bound, bound)
        b = jax.random.uniform(kb, (1, fan_out), jnp.float32, -bound, bound)
        return w, b

    w1, b1 = lin(ks[0], ks[1], size, 128)
    w2, b2 = lin(ks[2], ks[3], 128, 256)
    w3, b3 = lin(ks[4], ks[5], 256, 512)
    w4, b4 = lin(ks[6], ks[7], 512, output)
    return {
        "w1": w1, "b1": b1,
        "g1": jnp.ones((1, 128), jnp.float32), "be1": jnp.zeros((1, 128), jnp.float32),
        "w2": w2, "b2": b2,
        "g2": jnp.ones((1, 256), jnp.float32), "be2": jnp.zeros((1, 256), jnp.float32),
        "w3": w3, "b3": b3,
        "w4": w4, "b4": b4,
    }


def _bn_exact(h, gamma, beta):
    mean = jnp.mean(h, axis=0, keepdims=True)
    var = jnp.mean((h - mean) ** 2, axis=0, keepdims=True)
    return gamma * (h - mean) * jax.lax.rsqrt(var + _EPS) + beta


def ltm_generator_ref_bf16(x, p):
    """Pure-JAX reference mirroring the kernel's bf16-operand / f32-accum math."""
    bf = jnp.bfloat16
    h = jnp.dot(x.astype(bf), p["w1"].astype(bf), preferred_element_type=jnp.float32)
    h = _leaky_relu(_bn_exact(h, p["g1"], p["be1"]))          # b1 cancelled by BN
    h = jnp.dot(h.astype(bf), p["w2"].astype(bf), preferred_element_type=jnp.float32)
    h = _leaky_relu(_bn_exact(h, p["g2"], p["be2"]))          # b2 cancelled by BN
    h = jnp.dot(h.astype(bf), p["w3"].astype(bf), preferred_element_type=jnp.float32)
    h = _leaky_relu(h + p["b3"])
    h = jnp.dot(h.astype(bf), p["w4"].astype(bf), preferred_element_type=jnp.float32)
    return h + p["b4"]


def ltm_generator_ref_f32(x, p):
    """Exact f32 PyTorch-training-mode reference (includes b1/b2)."""
    h = x @ p["w1"] + p["b1"]
    h = _leaky_relu(_bn_exact(h, p["g1"], p["be1"]))
    h = h @ p["w2"] + p["b2"]
    h = _leaky_relu(_bn_exact(h, p["g2"], p["be2"]))
    h = _leaky_relu(h @ p["w3"] + p["b3"])
    return h @ p["w4"] + p["b4"]


if __name__ == "__main__":
    B, SIZE, OUTPUT = 8, 32, 64

    key = jax.random.PRNGKey(0)
    kx, kp = jax.random.split(key)
    x = jax.random.normal(kx, (B, SIZE), jnp.float32)
    params = init_params(kp, SIZE, OUTPUT)

    out = ltm_generator(x, params)
    out = jax.block_until_ready(out)
    assert out.shape == (B, OUTPUT)

    # Tight check against a reference using the same bf16-operand matmuls.
    ref_bf16 = ltm_generator_ref_bf16(x, params)
    assert jnp.allclose(out, ref_bf16, atol=2e-3, rtol=2e-3)

    # Loose semantic check against the exact f32 PyTorch-style forward
    # (differences come only from bf16 matmul operands).
    ref_f32 = ltm_generator_ref_f32(x, params)
    assert jnp.allclose(out, ref_f32, atol=1e-1, rtol=1e-1)

    print("KERNEL_OK")
</pallas_src>

<mosaic_0001>
module attributes {stable_mosaic.version = 11 : i64} {
  func.func @ltm_generator_kernel(%arg0: memref<8x128xbf16, #tpu.memory_space<vmem>>, %arg1: memref<128x128xbf16, #tpu.memory_space<vmem>>, %arg2: memref<1x128xf32, #tpu.memory_space<vmem>>, %arg3: memref<1x128xf32, #tpu.memory_space<vmem>>, %arg4: memref<128x256xbf16, #tpu.memory_space<vmem>>, %arg5: memref<1x256xf32, #tpu.memory_space<vmem>>, %arg6: memref<1x256xf32, #tpu.memory_space<vmem>>, %arg7: memref<256x512xbf16, #tpu.memory_space<vmem>>, %arg8: memref<1x512xf32, #tpu.memory_space<vmem>>, %arg9: memref<512x128xbf16, #tpu.memory_space<vmem>>, %arg10: memref<1x128xf32, #tpu.memory_space<vmem>>, %arg11: memref<8x128xf32, #tpu.memory_space<vmem>>) attributes {dimension_semantics = [], scalar_prefetch = 0 : i64, scratch_operands = 0 : i64, tpu.core_type = #tpu.core_type<tc>} {
    %c0 = arith.constant 0 : index
    %c0_0 = arith.constant 0 : index
    %0 = vector.load %arg0[%c0, %c0_0] : memref<8x128xbf16, #tpu.memory_space<vmem>>, vector<8x128xbf16>
    %c0_1 = arith.constant 0 : index
    %c0_2 = arith.constant 0 : index
    %1 = vector.load %arg1[%c0_1, %c0_2] : memref<128x128xbf16, #tpu.memory_space<vmem>>, vector<128x128xbf16>
    %cst = arith.constant dense<0.000000e+00> : vector<8x128xf32>
    %2 = tpu.matmul %0, %1, %cst {dimension_numbers = #tpu.dot_dimension_numbers<[1], [0], [0], [1], [0, 0, 1, 1], [], []>} : vector<8x128xbf16>, vector<128x128xbf16>, vector<8x128xf32> -> vector<8x128xf32>
    %c0_3 = arith.constant 0 : index
    %c0_4 = arith.constant 0 : index
    %3 = vector.load %arg2[%c0_3, %c0_4] : memref<1x128xf32, #tpu.memory_space<vmem>>, vector<1x128xf32>
    %c0_5 = arith.constant 0 : index
    %c0_6 = arith.constant 0 : index
    %4 = vector.load %arg3[%c0_5, %c0_6] : memref<1x128xf32, #tpu.memory_space<vmem>>, vector<1x128xf32>
    %cst_7 = arith.constant dense<0.000000e+00> : vector<128xf32>
    %5 = vector.multi_reduction <add>, %2, %cst_7 [0] : vector<8x128xf32> to vector<128xf32>
    %6 = vector.shape_cast %5 : vector<128xf32> to vector<1x128xf32>
    %7 = arith.mulf %2, %2 : vector<8x128xf32>
    %cst_8 = arith.constant dense<0.000000e+00> : vector<128xf32>
    %8 = vector.multi_reduction <add>, %7, %cst_8 [0] : vector<8x128xf32> to vector<128xf32>
    %9 = vector.shape_cast %8 : vector<128xf32> to vector<1x128xf32>
    %cst_9 = arith.constant 1.250000e-01 : f32
    %10 = vector.broadcast %cst_9 : f32 to vector<1x128xf32>
    %11 = arith.mulf %6, %10 : vector<1x128xf32>
    %cst_10 = arith.constant 1.250000e-01 : f32
    %12 = vector.broadcast %cst_10 : f32 to vector<1x128xf32>
    %13 = arith.mulf %9, %12 : vector<1x128xf32>
    %14 = arith.mulf %11, %11 : vector<1x128xf32>
    %15 = arith.subf %13, %14 : vector<1x128xf32>
    %cst_11 = arith.constant 9.99999974E-6 : f32
    %16 = vector.broadcast %cst_11 : f32 to vector<1x128xf32>
    %17 = arith.addf %15, %16 : vector<1x128xf32>
    %18 = math.rsqrt %17 : vector<1x128xf32>
    %19 = arith.mulf %3, %18 : vector<1x128xf32>
    %20 = arith.mulf %11, %19 : vector<1x128xf32>
    %21 = arith.subf %4, %20 : vector<1x128xf32>
    %22 = vector.broadcast %19 : vector<1x128xf32> to vector<8x128xf32>
    %23 = arith.mulf %2, %22 : vector<8x128xf32>
    %24 = vector.broadcast %21 : vector<1x128xf32> to vector<8x128xf32>
    %25 = arith.addf %23, %24 : vector<8x128xf32>
    %cst_12 = arith.constant 0.000000e+00 : f32
    %26 = vector.broadcast %cst_12 : f32 to vector<8x128xf32>
    %27 = arith.cmpf ogt, %25, %26 : vector<8x128xf32>
    %cst_13 = arith.constant 2.000000e-01 : f32
    %28 = vector.broadcast %cst_13 : f32 to vector<8x128xf32>
    %29 = arith.mulf %28, %25 : vector<8x128xf32>
    %30 = arith.select %27, %25, %29 : vector<8x128xi1>, vector<8x128xf32>
    %31 = arith.truncf %30 : vector<8x128xf32> to vector<8x128xbf16>
    %c0_14 = arith.constant 0 : index
    %c0_15 = arith.constant 0 : index
    %32 = vector.load %arg4[%c0_14, %c0_15] : memref<128x256xbf16, #tpu.memory_space<vmem>>, vector<128x256xbf16>
    %cst_16 = arith.constant dense<0.000000e+00> : vector<8x256xf32>
    %33 = tpu.matmul %31, %32, %cst_16 {dimension_numbers = #tpu.dot_dimension_numbers<[1], [0], [0], [1], [0, 0, 1, 1], [], []>} : vector<8x128xbf16>, vector<128x256xbf16>, vector<8x256xf32> -> vector<8x256xf32>
    %c0_17 = arith.constant 0 : index
    %c0_18 = arith.constant 0 : index
    %34 = vector.load %arg5[%c0_17, %c0_18] : memref<1x256xf32, #tpu.memory_space<vmem>>, vector<1x256xf32>
    %c0_19 = arith.constant 0 : index
    %c0_20 = arith.constant 0 : index
    %35 = vector.load %arg6[%c0_19, %c0_20] : memref<1x256xf32, #tpu.memory_space<vmem>>, vector<1x256xf32>
    %cst_21 = arith.constant dense<0.000000e+00> : vector<256xf32>
    %36 = vector.multi_reduction <add>, %33, %cst_21 [0] : vector<8x256xf32> to vector<256xf32>
    %37 = vector.shape_cast %36 : vector<256xf32> to vector<1x256xf32>
    %38 = arith.mulf %33, %33 : vector<8x256xf32>
    %cst_22 = arith.constant dense<0.000000e+00> : vector<256xf32>
    %39 = vector.multi_reduction <add>, %38, %cst_22 [0] : vector<8x256xf32> to vector<256xf32>
    %40 = vector.shape_cast %39 : vector<256xf32> to vector<1x256xf32>
    %cst_23 = arith.constant 1.250000e-01 : f32
    %41 = vector.broadcast %cst_23 : f32 to vector<1x256xf32>
    %42 = arith.mulf %37, %41 : vector<1x256xf32>
    %cst_24 = arith.constant 1.250000e-01 : f32
    %43 = vector.broadcast %cst_24 : f32 to vector<1x256xf32>
    %44 = arith.mulf %40, %43 : vector<1x256xf32>
    %45 = arith.mulf %42, %42 : vector<1x256xf32>
    %46 = arith.subf %44, %45 : vector<1x256xf32>
    %cst_25 = arith.constant 9.99999974E-6 : f32
    %47 = vector.broadcast %cst_25 : f32 to vector<1x256xf32>
    %48 = arith.addf %46, %47 : vector<1x256xf32>
    %49 = math.rsqrt %48 : vector<1x256xf32>
    %50 = arith.mulf %34, %49 : vector<1x256xf32>
    %51 = arith.mulf %42, %50 : vector<1x256xf32>
    %52 = arith.subf %35, %51 : vector<1x256xf32>
    %53 = vector.broadcast %50 : vector<1x256xf32> to vector<8x256xf32>
    %54 = arith.mulf %33, %53 : vector<8x256xf32>
    %55 = vector.broadcast %52 : vector<1x256xf32> to vector<8x256xf32>
    %56 = arith.addf %54, %55 : vector<8x256xf32>
    %cst_26 = arith.constant 0.000000e+00 : f32
    %57 = vector.broadcast %cst_26 : f32 to vector<8x256xf32>
    %58 = arith.cmpf ogt, %56, %57 : vector<8x256xf32>
    %cst_27 = arith.constant 2.000000e-01 : f32
    %59 = vector.broadcast %cst_27 : f32 to vector<8x256xf32>
    %60 = arith.mulf %59, %56 : vector<8x256xf32>
    %61 = arith.select %58, %56, %60 : vector<8x256xi1>, vector<8x256xf32>
    %62 = arith.truncf %61 : vector<8x256xf32> to vector<8x256xbf16>
    %c0_28 = arith.constant 0 : index
    %c0_29 = arith.constant 0 : index
    %63 = vector.load %arg7[%c0_28, %c0_29] : memref<256x512xbf16, #tpu.memory_space<vmem>>, vector<256x512xbf16>
    %cst_30 = arith.constant dense<0.000000e+00> : vector<8x512xf32>
    %64 = tpu.matmul %62, %63, %cst_30 {dimension_numbers = #tpu.dot_dimension_numbers<[1], [0], [0], [1], [0, 0, 1, 1], [], []>} : vector<8x256xbf16>, vector<256x512xbf16>, vector<8x512xf32> -> vector<8x512xf32>
    %c0_31 = arith.constant 0 : index
    %c0_32 = arith.constant 0 : index
    %65 = vector.load %arg8[%c0_31, %c0_32] : memref<1x512xf32, #tpu.memory_space<vmem>>, vector<1x512xf32>
    %66 = vector.broadcast %65 : vector<1x512xf32> to vector<8x512xf32>
    %67 = arith.addf %64, %66 : vector<8x512xf32>
    %cst_33 = arith.constant 0.000000e+00 : f32
    %68 = vector.broadcast %cst_33 : f32 to vector<8x512xf32>
    %69 = arith.cmpf ogt, %67, %68 : vector<8x512xf32>
    %cst_34 = arith.constant 2.000000e-01 : f32
    %70 = vector.broadcast %cst_34 : f32 to vector<8x512xf32>
    %71 = arith.mulf %70, %67 : vector<8x512xf32>
    %72 = arith.select %69, %67, %71 : vector<8x512xi1>, vector<8x512xf32>
    %73 = arith.truncf %72 : vector<8x512xf32> to vector<8x512xbf16>
    %c0_35 = arith.constant 0 : index
    %c0_36 = arith.constant 0 : index
    %74 = vector.load %arg9[%c0_35, %c0_36] : memref<512x128xbf16, #tpu.memory_space<vmem>>, vector<512x128xbf16>
    %cst_37 = arith.constant dense<0.000000e+00> : vector<8x128xf32>
    %75 = tpu.matmul %73, %74, %cst_37 {dimension_numbers = #tpu.dot_dimension_numbers<[1], [0], [0], [1], [0, 0, 1, 1], [], []>} : vector<8x512xbf16>, vector<512x128xbf16>, vector<8x128xf32> -> vector<8x128xf32>
    %c0_38 = arith.constant 0 : index
    %c0_39 = arith.constant 0 : index
    %76 = vector.load %arg10[%c0_38, %c0_39] : memref<1x128xf32, #tpu.memory_space<vmem>>, vector<1x128xf32>
    %77 = vector.broadcast %76 : vector<1x128xf32> to vector<8x128xf32>
    %78 = arith.addf %75, %77 : vector<8x128xf32>
    %c0_40 = arith.constant 0 : index
    %c0_41 = arith.constant 0 : index
    %79 = vector.load %arg11[%c0_40, %c0_41] : memref<8x128xf32, #tpu.memory_space<vmem>>, vector<8x128xf32>
    tpu.vector_store %arg11[%c0_40, %c0_41], %78 {strides = array<i32>} : memref<8x128xf32, #tpu.memory_space<vmem>>, vector<8x128xf32>,
    return
  }
}

</mosaic_0001>

<llo_original>
// kernel: tpu_custom_call.1
$region0: #{tpu_custom_call.1}
  #allocation0 [shape = 'u32[]', space=smem, size = 0x4, offset = 0x4, fixed_abs, tag = 'smem constant byte address 0x4 - core index']
  #allocation1 [shape = 'u32[144,128]{1,0:T(1,128)}', space=vmem, size = 0x12000, scoped, tag = 'internal scratch']
  %s0 = inlined_call_operand.hbm [shape: bf16[8,128], index: 0, kind: input, shape index: {}]
  %s1 = inlined_call_operand.hbm [shape: bf16[128,128], index: 1, kind: input, shape index: {}]
  %s2 = inlined_call_operand.vmem [shape: f32[1,128], index: 2, kind: input, shape index: {}]
  %s3 = inlined_call_operand.vmem [shape: f32[1,128], index: 3, kind: input, shape index: {}]
  %s4 = inlined_call_operand.hbm [shape: bf16[128,256], index: 4, kind: input, shape index: {}]
  %s5 = inlined_call_operand.vmem [shape: f32[1,256], index: 5, kind: input, shape index: {}]
  %s6 = inlined_call_operand.vmem [shape: f32[1,256], index: 6, kind: input, shape index: {}]
  %s7 = inlined_call_operand.hbm [shape: bf16[256,512], index: 7, kind: input, shape index: {}]
  %s8 = inlined_call_operand.vmem [shape: f32[1,512], index: 8, kind: input, shape index: {}]
  %s9 = inlined_call_operand.hbm [shape: bf16[512,128], index: 9, kind: input, shape index: {}]
  %s10 = inlined_call_operand.vmem [shape: f32[1,128], index: 10, kind: input, shape index: {}]
  %s11 = inlined_call_operand.hbm [shape: f32[8,128], index: 11, kind: output, shape index: {}]
  %s12 = sld [smem:[#allocation0]]
  $region74: #{tpu_custom_call.1} parent=0
    _
  %s14 = ssub.s32 1, %s12
  %s15 = scalar_select 0, %s14, %s12
  $region1: #{tpu_custom_call.1} parent=0
    #allocation2 [shape = 'u8[2048]{0}', space=vmem, size = 0x800, scoped, tag = 'input window, operand 0, single buffered']
    #allocation3 [shape = 's32[1]{0}', space=sflag, size = 0x4, scoped, tag = 'scoped memory for tpu_custom_call.1']
    #allocation4 [shape = 's32[1]{0}', space=sflag, size = 0x4, scoped, tag = 'scoped memory for tpu_custom_call.1']
    #allocation5 [shape = 'u8[32768]{0}', space=vmem, size = 0x8000, scoped, tag = 'input window, operand 1, single buffered']
    #allocation6 [shape = 's32[1]{0}', space=sflag, size = 0x4, scoped, tag = 'scoped memory for tpu_custom_call.1']
    #allocation7 [shape = 'u8[65536]{0}', space=vmem, size = 0x10000, scoped, tag = 'input window, operand 4, single buffered']
    #allocation8 [shape = 'u8[262144]{0}', space=vmem, size = 0x40000, scoped, tag = 'input window, operand 7, single buffered']
    #allocation9 [shape = 's32[1]{0}', space=sflag, size = 0x4, scoped, tag = 'scoped memory for tpu_custom_call.1']
    #allocation10 [shape = 'u8[131072]{0}', space=vmem, size = 0x20000, scoped, tag = 'input window, operand 9, single buffered']
    #allocation11 [shape = 'u8[4096]{0}', space=vmem, size = 0x1000, scoped, tag = 'output window, operand 0, single buffered']
    %16 = vsyncpa [#allocation3], 0
    %17 = vsyncpa [#allocation6], 0
    %18 = vsyncpa [#allocation9], 0
    %19 = vsyncpa [#allocation4], 0
    // Predicated region
    $region2: #{tpu_custom_call.1} parent=1 // pred_check
      _
    $region3: #{tpu_custom_call.1} parent=1 // pred_check_branch
      %21 = sbr.rel (0) target = $region5
    $region4: #{tpu_custom_call.1} parent=1 // pred_region
      %s23 = ssub.s32 64, 64
      %24 = vsyncadd [#allocation3], %s23
      %s26 = sshll.u32 [#allocation2], 4
      %s27 = int_to_ptr.vmem [resolvable:$true] %s26
      %29 = dma.hbm_to_vmem [thread:$0]  %s0, 64, %s27, [#allocation3]
    $region5: #{tpu_custom_call.1} parent=1 // pred_fallthru
      _
    // Predicated region
    $region6: #{tpu_custom_call.1} parent=1 // pred_check
      _
    $region7: #{tpu_custom_call.1} parent=1 // pred_check_branch
      %31 = sbr.rel (0) target = $region9
    $region8: #{tpu_custom_call.1} parent=1 // pred_region
      %s33 = ssub.s32 1024, 1024
      %34 = vsyncadd [#allocation6], %s33
      %s35 = sshll.u32 [#allocation5], 4
      %s36 = int_to_ptr.vmem [resolvable:$true] %s35
      %41 = dma.hbm_to_vmem [thread:$0]  %s1, 1024, %s36, [#allocation6], 64, 64, 4
    $region9: #{tpu_custom_call.1} parent=1 // pred_fallthru
      _
    // Predicated region
    $region10: #{tpu_custom_call.1} parent=1 // pred_check
      _
    $region11: #{tpu_custom_call.1} parent=1 // pred_check_branch
      %43 = sbr.rel (0) target = $region13
    $region12: #{tpu_custom_call.1} parent=1 // pred_region
      _
    $region13: #{tpu_custom_call.1} parent=1 // pred_fallthru
      _
    // Predicated region
    $region14: #{tpu_custom_call.1} parent=1 // pred_check
      _
    $region15: #{tpu_custom_call.1} parent=1 // pred_check_branch
      %45 = sbr.rel (0) target = $region17
    $region16: #{tpu_custom_call.1} parent=1 // pred_region
      _
    $region17: #{tpu_custom_call.1} parent=1 // pred_fallthru
      _
    // Predicated region
    $region18: #{tpu_custom_call.1} parent=1 // pred_check
      _
    $region19: #{tpu_custom_call.1} parent=1 // pred_check_branch
      %47 = sbr.rel (0) target = $region21
    $region20: #{tpu_custom_call.1} parent=1 // pred_region
      %s49 = ssub.s32 2048, 2048
      %50 = vsyncadd [#allocation6], %s49
      %s51 = sshll.u32 [#allocation7], 4
      %s52 = int_to_ptr.vmem [resolvable:$true] %s51
      %57 = dma.hbm_to_vmem [thread:$0]  %s4, 2048, %s52, [#allocation6], 128, 128, 8
    $region21: #{tpu_custom_call.1} parent=1 // pred_fallthru
      _
    // Predicated region
    $region22: #{tpu_custom_call.1} parent=1 // pred_check
      _
    $region23: #{tpu_custom_call.1} parent=1 // pred_check_branch
      %59 = sbr.rel (0) target = $region25
    $region24: #{tpu_custom_call.1} parent=1 // pred_region
      _
    $region25: #{tpu_custom_call.1} parent=1 // pred_fallthru
      _
    // Predicated region
    $region26: #{tpu_custom_call.1} parent=1 // pred_check
      _
    $region27: #{tpu_custom_call.1} parent=1 // pred_check_branch
      %61 = sbr.rel (0) target = $region29
    $region28: #{tpu_custom_call.1} parent=1 // pred_region
      _
    $region29: #{tpu_custom_call.1} parent=1 // pred_fallthru
      _
    // Predicated region
    $region30: #{tpu_custom_call.1} parent=1 // pred_check
      _
    $region31: #{tpu_custom_call.1} parent=1 // pred_check_branch
      %63 = sbr.rel (0) target = $region33
    $region32: #{tpu_custom_call.1} parent=1 // pred_region
      %s65 = ssub.s32 8192, 8192
      %66 = vsyncadd [#allocation9], %s65
      %s67 = sshll.u32 [#allocation8], 4
      %s68 = int_to_ptr.vmem [resolvable:$true] %s67
      %73 = dma.hbm_to_vmem [thread:$0]  %s7, 8192, %s68, [#allocation9], 256, 256, 16
    $region33: #{tpu_custom_call.1} parent=1 // pred_fallthru
      _
    // Predicated region
    $region34: #{tpu_custom_call.1} parent=1 // pred_check
      _
    $region35: #{tpu_custom_call.1} parent=1 // pred_check_branch
      %75 = sbr.rel (0) target = $region37
    $region36: #{tpu_custom_call.1} parent=1 // pred_region
      _
    $region37: #{tpu_custom_call.1} parent=1 // pred_fallthru
      _
    // Predicated region
    $region38: #{tpu_custom_call.1} parent=1 // pred_check
      _
    $region39: #{tpu_custom_call.1} parent=1 // pred_check_branch
      %77 = sbr.rel (0) target = $region41
    $region40: #{tpu_custom_call.1} parent=1 // pred_region
      %s79 = ssub.s32 4096, 4096
      %80 = vsyncadd [#allocation9], %s79
      %s81 = sshll.u32 [#allocation10], 4
      %s82 = int_to_ptr.vmem [resolvable:$true] %s81
      %87 = dma.hbm_to_vmem [thread:$0]  %s9, 4096, %s82, [#allocation9], 64, 64, 4
    $region41: #{tpu_custom_call.1} parent=1 // pred_fallthru
      _
    // Predicated region
    $region42: #{tpu_custom_call.1} parent=1 // pred_check
      _
    $region43: #{tpu_custom_call.1} parent=1 // pred_check_branch
      %89 = sbr.rel (0) target = $region45
    $region44: #{tpu_custom_call.1} parent=1 // pred_region
      _
    $region45: #{tpu_custom_call.1} parent=1 // pred_fallthru
      _
    // Predicated region
    $region46: #{tpu_custom_call.1} parent=1 // pred_check
      _
    $region47: #{tpu_custom_call.1} parent=1 // pred_check_branch
      %91 = sbr.rel (0) target = $region49
    $region48: #{tpu_custom_call.1} parent=1 // pred_region
      %92 = dma.done [#allocation3], 64
    $region49: #{tpu_custom_call.1} parent=1 // pred_fallthru
      _
    // Predicated region
    $region50: #{tpu_custom_call.1} parent=1 // pred_check
      _
    $region51: #{tpu_custom_call.1} parent=1 // pred_check_branch
      %94 = sbr.rel (0) target = $region53
    $region52: #{tpu_custom_call.1} parent=1 // pred_region
      %95 = dma.done [#allocation6], 1024
    $region53: #{tpu_custom_call.1} parent=1 // pred_fallthru
      _
    // Predicated region
    $region54: #{tpu_custom_call.1} parent=1 // pred_check
      _
    $region55: #{tpu_custom_call.1} parent=1 // pred_check_branch
      %97 = sbr.rel (0) target = $region57
    $region56: #{tpu_custom_call.1} parent=1 // pred_region
      %98 = dma.done [#allocation6], 2048
    $region57: #{tpu_custom_call.1} parent=1 // pred_fallthru
      _
    // Predicated region
    $region58: #{tpu_custom_call.1} parent=1 // pred_check
      _
    $region59: #{tpu_custom_call.1} parent=1 // pred_check_branch
      %100 = sbr.rel (0) target = $region61
    $region60: #{tpu_custom_call.1} parent=1 // pred_region
      %101 = dma.done [#allocation9], 8192
    $region61: #{tpu_custom_call.1} parent=1 // pred_fallthru
      _
    // Predicated region
    $region62: #{tpu_custom_call.1} parent=1 // pred_check
      _
    $region63: #{tpu_custom_call.1} parent=1 // pred_check_branch
      %103 = sbr.rel (0) target = $region65
    $region64: #{tpu_custom_call.1} parent=1 // pred_region
      %104 = dma.done [#allocation9], 4096
    $region65: #{tpu_custom_call.1} parent=1 // pred_fallthru
      _
    %v106 = vld [vmem:[#allocation2] sm:$0xf]
    %v107 = vld [vmem:[#allocation5] sm:$0xf]
    %v108 = vld [vmem:[#allocation5 + $0x4] sm:$0xf]
    %v109 = vld [vmem:[#allocation5 + $0x8] sm:$0xf]
    %v110 = vld [vmem:[#allocation5 + $0xc] sm:$0xf]
    %v111 = vld [vmem:[#allocation5 + $0x10] sm:$0xf]
    %v112 = vld [vmem:[#allocation5 + $0x14] sm:$0xf]
    %v113 = vld [vmem:[#allocation5 + $0x18] sm:$0xf]
    %v114 = vld [vmem:[#allocation5 + $0x1c] sm:$0xf]
    %v115 = vld [vmem:[#allocation5 + $0x20] sm:$0xf]
    %v116 = vld [vmem:[#allocation5 + $0x24] sm:$0xf]
    %v117 = vld [vmem:[#allocation5 + $0x28] sm:$0xf]
    %v118 = vld [vmem:[#allocation5 + $0x2c] sm:$0xf]
    %v119 = vld [vmem:[#allocation5 + $0x30] sm:$0xf]
    %v120 = vld [vmem:[#allocation5 + $0x34] sm:$0xf]
    %v121 = vld [vmem:[#allocation5 + $0x38] sm:$0xf]
    %v122 = vld [vmem:[#allocation5 + $0x3c] sm:$0xf]
    %v139 = vunpack.c.l.b16 %v107
    %v140 = vunpack.c.l.b16 %v108
    %v141 = vunpack.c.l.b16 %v109
    %v142 = vunpack.c.l.b16 %v110
    %v143 = vunpack.c.l.b16 %v111
    %v144 = vunpack.c.l.b16 %v112
    %v145 = vunpack.c.l.b16 %v113
    %v146 = vunpack.c.l.b16 %v114
    %v147 = vunpack.c.l.b16 %v115
    %v148 = vunpack.c.l.b16 %v116
    %v149 = vunpack.c.l.b16 %v117
    %v150 = vunpack.c.l.b16 %v118
    %v151 = vunpack.c.l.b16 %v119
    %v152 = vunpack.c.l.b16 %v120
    %v153 = vunpack.c.l.b16 %v121
    %v154 = vunpack.c.l.b16 %v122
    %v155 = vpack.c.b16 %v140, %v139
    %v156 = vpack.c.b16 %v142, %v141
    %v157 = vpack.c.b16 %v144, %v143
    %v158 = vpack.c.b16 %v146, %v145
    %v159 = vpack.c.b16 %v148, %v147
    %v160 = vpack.c.b16 %v150, %v149
    %v161 = vpack.c.b16 %v152, %v151
    %v162 = vpack.c.b16 %v154, %v153
    %171 = vmatprep.subr.bf16.mxu0 0
    %172 = vmatpush1.bf16.msra.mxu0 %v155
    %173 = vmatprep.subr.bf16.mxu0 0
    %174 = vmatpush1.bf16.msra.mxu0 %v156
    %175 = vmatprep.subr.bf16.mxu0 0
    %176 = vmatpush1.bf16.msra.mxu0 %v157
    %177 = vmatprep.subr.bf16.mxu0 0
    %178 = vmatpush1.bf16.msra.mxu0 %v158
    %179 = vmatprep.subr.bf16.mxu0 0
    %180 = vmatpush1.bf16.msra.mxu0 %v159
    %181 = vmatprep.subr.bf16.mxu0 0
    %182 = vmatpush1.bf16.msra.mxu0 %v160
    %183 = vmatprep.subr.bf16.mxu0 0
    %184 = vmatpush1.bf16.msra.mxu0 %v161
    %185 = vmatprep.subr.bf16.mxu0 0
    %186 = vmatpush1.bf16.msra.mxu0 %v162
    %187 = vmatprep.subr.bf16.mxu0 0
    %188 = vmatpush1.bf16.msra.mxu0 0
    %189 = vmatprep.subr.bf16.mxu0 0
    %190 = vmatpush1.bf16.msra.mxu0 0
    %191 = vmatprep.subr.bf16.mxu0 0
    %192 = vmatpush1.bf16.msra.mxu0 0
    %193 = vmatprep.subr.bf16.mxu0 0
    %194 = vmatpush1.bf16.msra.mxu0 0
    %195 = vmatprep.subr.bf16.mxu0 0
    %196 = vmatpush1.bf16.msra.mxu0 0
    %197 = vmatprep.subr.bf16.mxu0 0
    %198 = vmatpush1.bf16.msra.mxu0 0
    %199 = vmatprep.subr.bf16.mxu0 0
    %200 = vmatpush1.bf16.msra.mxu0 0
    %201 = vmatprep.subr.bf16.mxu0 0
    %202 = vmatpush1.bf16.msra.mxu0 0
    %203 = vmatprep.mubr.bf16.mxu0 0
    %204 = vmatmul.mubr.bf16.gmra.mrb[0].mxu0 %v106
    %v205 = vpop.f32.mrb[0].mxu0
    %v206 = vadd.f32 0.0, %v205
    %v207 = vpop.f32.mrb[0].mxu0
    %v208 = vpop.f32.mrb[0].mxu0
    %v209 = vpop.f32.mrb[0].mxu0
    %210 = vdwg.mxu0
    %v211 = vld [vmem:[%s2] sm:$0x1]
    %v212 = vld [vmem:[%s3] sm:$0x1]
    %v213 = vrot.slane %v206, 4
    %v214 = vadd.f32 %v206, %v213
    %v215 = vrot.slane %v214, 2
    %v216 = vadd.f32 %v214, %v215
    %v217 = vrot.slane %v216, 1
    %v218 = vadd.f32 %v216, %v217
    %v219 = vmul.f32 %v206, %v206
    %v220 = vrot.slane %v219, 4
    %v221 = vadd.f32 %v219, %v220
    %v222 = vrot.slane %v221, 2
    %v223 = vadd.f32 %v221, %v222
    %v224 = vrot.slane %v223, 1
    %v225 = vadd.f32 %v223, %v224
    %v226 = vmul.f32 %v218, 0.125
    %v227 = vmul.f32 %v225, 0.125
    %v228 = vmul.f32 %v226, %v226
    %v229 = vsub.f32 %v227, %v228
    %v230 = vadd.f32 %v229, 1e-05
    %v231 = vrsqrt.pop %v230
    %v232 = vmul.f32 %v211, %v231
    %v233 = vmul.f32 %v226, %v232
    %v234 = vsub.f32 %v212, %v233
    %v236 = vlaneseq
    %v237 = vshrl.u32 %v236, 7
    %v238 = vsub.s32 0, %v237
    %v239 = vrot.slane %v232, %v238
    %v241 = vmul.f32 %v206, %v239
    %v243 = vlaneseq
    %v244 = vshrl.u32 %v243, 7
    %v245 = vsub.s32 0, %v244
    %v246 = vrot.slane %v234, %v245
    %v248 = vadd.f32 %v241, %v246
    %vm249 = vcmp.gt.f32.partialorder %v248, 0.0
    %v250 = vmul.f32 %v248, 0.2
    %v251 = vsel %vm249, %v248, %v250
    %v252 = vpack.c.bf16 %v251, %v251
    %v253 = vld [vmem:[#allocation7] sm:$0xff]
    %v254 = vld [vmem:[#allocation7 + $0x8] sm:$0xff]
    %v255 = vld [vmem:[#allocation7 + $0x10] sm:$0xff]
    %v256 = vld [vmem:[#allocation7 + $0x18] sm:$0xff]
    %v257 = vld [vmem:[#allocation7 + $0x20] sm:$0xff]
    %v258 = vld [vmem:[#allocation7 + $0x28] sm:$0xff]
    %v259 = vld [vmem:[#allocation7 + $0x30] sm:$0xff]
    %v260 = vld [vmem:[#allocation7 + $0x38] sm:$0xff]
    %v261 = vld [vmem:[#allocation7 + $0x40] sm:$0xff]
    %v262 = vld [vmem:[#allocation7 + $0x48] sm:$0xff]
    %v263 = vld [vmem:[#allocation7 + $0x50] sm:$0xff]
    %v264 = vld [vmem:[#allocation7 + $0x58] sm:$0xff]
    %v265 = vld [vmem:[#allocation7 + $0x60] sm:$0xff]
    %v266 = vld [vmem:[#allocation7 + $0x68] sm:$0xff]
    %v267 = vld [vmem:[#allocation7 + $0x70] sm:$0xff]
    %v268 = vld [vmem:[#allocation7 + $0x78] sm:$0xff]
    %v285 = vunpack.c.l.b16 %v253
    %v286 = vunpack.c.h.b16 %v253
    %v287 = vunpack.c.l.b16 %v254
    %v288 = vunpack.c.h.b16 %v254
    %v289 = vunpack.c.l.b16 %v255
    %v290 = vunpack.c.h.b16 %v255
    %v291 = vunpack.c.l.b16 %v256
    %v292 = vunpack.c.h.b16 %v256
    %v293 = vunpack.c.l.b16 %v257
    %v294 = vunpack.c.h.b16 %v257
    %v295 = vunpack.c.l.b16 %v258
    %v296 = vunpack.c.h.b16 %v258
    %v297 = vunpack.c.l.b16 %v259
    %v298 = vunpack.c.h.b16 %v259
    %v299 = vunpack.c.l.b16 %v260
    %v300 = vunpack.c.h.b16 %v260
    %v301 = vunpack.c.l.b16 %v261
    %v302 = vunpack.c.h.b16 %v261
    %v303 = vunpack.c.l.b16 %v262
    %v304 = vunpack.c.h.b16 %v262
    %v305 = vunpack.c.l.b16 %v263
    %v306 = vunpack.c.h.b16 %v263
    %v307 = vunpack.c.l.b16 %v264
    %v308 = vunpack.c.h.b16 %v264
    %v309 = vunpack.c.l.b16 %v265
    %v310 = vunpack.c.h.b16 %v265
    %v311 = vunpack.c.l.b16 %v266
    %v312 = vunpack.c.h.b16 %v266
    %v313 = vunpack.c.l.b16 %v267
    %v314 = vunpack.c.h.b16 %v267
    %v315 = vunpack.c.l.b16 %v268
    %v316 = vunpack.c.h.b16 %v268
    %v317 = vpack.c.b16 %v287, %v285
    %v318 = vpack.c.b16 %v288, %v286
    %v319 = vpack.c.b16 %v291, %v289
    %v320 = vpack.c.b16 %v292, %v290
    %v321 = vpack.c.b16 %v295, %v293
    %v322 = vpack.c.b16 %v296, %v294
    %v323 = vpack.c.b16 %v299, %v297
    %v324 = vpack.c.b16 %v300, %v298
    %v325 = vpack.c.b16 %v303, %v301
    %v326 = vpack.c.b16 %v304, %v302
    %v327 = vpack.c.b16 %v307, %v305
    %v328 = vpack.c.b16 %v308, %v306
    %v329 = vpack.c.b16 %v311, %v309
    %v330 = vpack.c.b16 %v312, %v310
    %v331 = vpack.c.b16 %v315, %v313
    %v332 = vpack.c.b16 %v316, %v314
    %349 = vmatprep.subr.bf16.mxu0 %v318
    %350 = vmatpush1.bf16.msra.mxu0 %v317
    %351 = vmatprep.subr.bf16.mxu0 %v320
    %352 = vmatpush1.bf16.msra.mxu0 %v319
    %353 = vmatprep.subr.bf16.mxu0 %v322
    %354 = vmatpush1.bf16.msra.mxu0 %v321
    %355 = vmatprep.subr.bf16.mxu0 %v324
    %356 = vmatpush1.bf16.msra.mxu0 %v323
    %357 = vmatprep.subr.bf16.mxu0 %v326
    %358 = vmatpush1.bf16.msra.mxu0 %v325
    %359 = vmatprep.subr.bf16.mxu0 %v328
    %360 = vmatpush1.bf16.msra.mxu0 %v327
    %361 = vmatprep.subr.bf16.mxu0 %v330
    %362 = vmatpush1.bf16.msra.mxu0 %v329
    %363 = vmatprep.subr.bf16.mxu0 %v332
    %364 = vmatpush1.bf16.msra.mxu0 %v331
    %365 = vmatprep.subr.bf16.mxu0 0
    %366 = vmatpush1.bf16.msra.mxu0 0
    %367 = vmatprep.subr.bf16.mxu0 0
    %368 = vmatpush1.bf16.msra.mxu0 0
    %369 = vmatprep.subr.bf16.mxu0 0
    %370 = vmatpush1.bf16.msra.mxu0 0
    %371 = vmatprep.subr.bf16.mxu0 0
    %372 = vmatpush1.bf16.msra.mxu0 0
    %373 = vmatprep.subr.bf16.mxu0 0
    %374 = vmatpush1.bf16.msra.mxu0 0
    %375 = vmatprep.subr.bf16.mxu0 0
    %376 = vmatpush1.bf16.msra.mxu0 0
    %377 = vmatprep.subr.bf16.mxu0 0
    %378 = vmatpush1.bf16.msra.mxu0 0
    %379 = vmatprep.subr.bf16.mxu0 0
    %380 = vmatpush1.bf16.msra.mxu0 0
    %381 = vmatprep.mubr.bf16.mxu0 0
    %382 = vmatmul.mubr.bf16.gmra.mrb[0].mxu0 %v252
    %v383 = vpop.f32.mrb[0].mxu0
    %v384 = vadd.f32 0.0, %v383
    %v385 = vpop.f32.mrb[0].mxu0
    %v386 = vadd.f32 0.0, %v385
    %v387 = vpop.f32.mrb[0].mxu0
    %v388 = vpop.f32.mrb[0].mxu0
    %389 = vdwg.mxu0
    %v390 = vld [vmem:[%s5] sm:$0x3]
    %v391 = vld [vmem:[%s6] sm:$0x3]
    %v392 = vrot.slane %v384, 4
    %v393 = vadd.f32 %v384, %v392
    %v394 = vrot.slane %v393, 2
    %v395 = vadd.f32 %v393, %v394
    %v396 = vrot.slane %v395, 1
    %v397 = vadd.f32 %v395, %v396
    %v398 = vrot.slane %v386, 4
    %v399 = vadd.f32 %v386, %v398
    %v400 = vrot.slane %v399, 2
    %v401 = vadd.f32 %v399, %v400
    %v402 = vrot.slane %v401, 1
    %v403 = vadd.f32 %v401, %v402
    %v404 = vmul.f32 %v384, %v384
    %v405 = vmul.f32 %v386, %v386
    %v406 = vrot.slane %v404, 4
    %v407 = vadd.f32 %v404, %v406
    %v408 = vrot.slane %v407, 2
    %v409 = vadd.f32 %v407, %v408
    %v410 = vrot.slane %v409, 1
    %v411 = vadd.f32 %v409, %v410
    %v412 = vrot.slane %v405, 4
    %v413 = vadd.f32 %v405, %v412
    %v414 = vrot.slane %v413, 2
    %v415 = vadd.f32 %v413, %v414
    %v416 = vrot.slane %v415, 1
    %v417 = vadd.f32 %v415, %v416
    %v418 = vmul.f32 %v397, 0.125
    %v419 = vmul.f32 %v403, 0.125
    %v420 = vmul.f32 %v411, 0.125
    %v421 = vmul.f32 %v417, 0.125
    %v422 = vmul.f32 %v418, %v418
    %v423 = vmul.f32 %v419, %v419
    %v424 = vsub.f32 %v420, %v422
    %v425 = vsub.f32 %v421, %v423
    %v426 = vadd.f32 %v424, 1e-05
    %v427 = vadd.f32 %v425, 1e-05
    %v428 = vrsqrt.pop %v426
    %v429 = vrsqrt.pop %v427
    %v432 = vcombine.low %v428, %v429
    %v434 = vunpack.c.l.s4 1966171168
    %v435 = vunpack.c.0.s8 %v434
    %v436 = vlaneseq
    %v437 = vshrl.u32 %v436, 7
    %v438 = vsub.s32 %v435, %v437
    %v439 = vrot.slane %v432, %v438
    %v441 = vunpack.c.l.s4 1966171168
    %v442 = vunpack.c.0.s8 %v441
    %v443 = vlaneseq
    %v444 = vshrl.u32 %v443, 7
    %v445 = vsub.s32 %v442, %v444
    %v446 = vrot.slane %v439, %v445
    %v448 = vmul.f32 %v390, %v446
    %v450 = vlaneseq
    %v451 = vshrl.u32 %v450, 7
    %v452 = vsub.s32 0, %v451
    %v453 = vrot.slane %v448, %v452
    %v454 = vlaneseq
    %v455 = vshrl.u32 %v454, 7
    %v456 = vsub.s32 1, %v455
    %v457 = vrot.slane %v448, %v456
    %v460 = vmul.f32 %v418, %v453
    %v461 = vmul.f32 %v419, %v457
    %v464 = vcombine.low %v460, %v461
    %v466 = vunpack.c.l.s4 1966171168
    %v467 = vunpack.c.0.s8 %v466
    %v468 = vlaneseq
    %v469 = vshrl.u32 %v468, 7
    %v470 = vsub.s32 %v467, %v469
    %v471 = vrot.slane %v464, %v470
    %v473 = vunpack.c.l.s4 1966171168
    %v474 = vunpack.c.0.s8 %v473
    %v475 = vlaneseq
    %v476 = vshrl.u32 %v475, 7
    %v477 = vsub.s32 %v474, %v476
    %v478 = vrot.slane %v471, %v477
    %v480 = vsub.f32 %v391, %v478
    %v481 = vmul.f32 %v384, %v453
    %v482 = vmul.f32 %v386, %v457
    %v484 = vlaneseq
    %v485 = vshrl.u32 %v484, 7
    %v486 = vsub.s32 0, %v485
    %v487 = vrot.slane %v480, %v486
    %v488 = vlaneseq
    %v489 = vshrl.u32 %v488, 7
    %v490 = vsub.s32 1, %v489
    %v491 = vrot.slane %v480, %v490
    %v494 = vadd.f32 %v481, %v487
    %v495 = vadd.f32 %v482, %v491
    %vm496 = vcmp.gt.f32.partialorder %v494, 0.0
    %vm497 = vcmp.gt.f32.partialorder %v495, 0.0
    %v498 = vmul.f32 %v494, 0.2
    %v499 = vmul.f32 %v495, 0.2
    %v500 = vsel %vm496, %v494, %v498
    %v501 = vsel %vm497, %v495, %v499
    %v502 = vpack.c.bf16 %v500, %v500
    %v503 = vpack.c.bf16 %v501, %v501
    %v504 = vld [vmem:[#allocation8] sm:$0xff]
    %v505 = vld [vmem:[#allocation8 + $0x8] sm:$0xff]
    %v506 = vld [vmem:[#allocation8 + $0x10] sm:$0xff]
    %v507 = vld [vmem:[#allocation8 + $0x18] sm:$0xff]
    %v508 = vld [vmem:[#allocation8 + $0x20] sm:$0xff]
    %v509 = vld [vmem:[#allocation8 + $0x28] sm:$0xff]
    %v510 = vld [vmem:[#allocation8 + $0x30] sm:$0xff]
    %v511 = vld [vmem:[#allocation8 + $0x38] sm:$0xff]
    %v512 = vld [vmem:[#allocation8 + $0x40] sm:$0xff]
    %v513 = vld [vmem:[#allocation8 + $0x48] sm:$0xff]
    %v514 = vld [vmem:[#allocation8 + $0x50] sm:$0xff]
    %v515 = vld [vmem:[#allocation8 + $0x58] sm:$0xff]
    %v516 = vld [vmem:[#allocation8 + $0x60] sm:$0xff]
    %v517 = vld [vmem:[#allocation8 + $0x68] sm:$0xff]
    %v518 = vld [vmem:[#allocation8 + $0x70] sm:$0xff]
    %v519 = vld [vmem:[#allocation8 + $0x78] sm:$0xff]
    %v520 = vld [vmem:[#allocation8 + $0x80] sm:$0xff]
    %v521 = vld [vmem:[#allocation8 + $0x88] sm:$0xff]
    %v522 = vld [vmem:[#allocation8 + $0x90] sm:$0xff]
    %v523 = vld [vmem:[#allocation8 + $0x98] sm:$0xff]
    %v524 = vld [vmem:[#allocation8 + $0xa0] sm:$0xff]
    %v525 = vld [vmem:[#allocation8 + $0xa8] sm:$0xff]
    %v526 = vld [vmem:[#allocation8 + $0xb0] sm:$0xff]
    %v527 = vld [vmem:[#allocation8 + $0xb8] sm:$0xff]
    %v528 = vld [vmem:[#allocation8 + $0xc0] sm:$0xff]
    %v529 = vld [vmem:[#allocation8 + $0xc8] sm:$0xff]
    %v530 = vld [vmem:[#allocation8 + $0xd0] sm:$0xff]
    %v531 = vld [vmem:[#allocation8 + $0xd8] sm:$0xff]
    %v532 = vld [vmem:[#allocation8 + $0xe0] sm:$0xff]
    %v533 = vld [vmem:[#allocation8 + $0xe8] sm:$0xff]
    %v534 = vld [vmem:[#allocation8 + $0xf0] sm:$0xff]
    %v535 = vld [vmem:[#allocation8 + $0xf8] sm:$0xff]
    %v536 = vld [vmem:[#allocation8 + $0x100] sm:$0xff]
    %v537 = vld [vmem:[#allocation8 + $0x108] sm:$0xff]
    %v538 = vld [vmem:[#allocation8 + $0x110] sm:$0xff]
    %v539 = vld [vmem:[#allocation8 + $0x118] sm:$0xff]
    %v540 = vld [vmem:[#allocation8 + $0x120] sm:$0xff]
    %v541 = vld [vmem:[#allocation8 + $0x128] sm:$0xff]
    %v542 = vld [vmem:[#allocation8 + $0x130] sm:$0xff]
    %v543 = vld [vmem:[#allocation8 + $0x138] sm:$0xff]
    %v544 = vld [vmem:[#allocation8 + $0x140] sm:$0xff]
    %v545 = vld [vmem:[#allocation8 + $0x148] sm:$0xff]
    %v546 = vld [vmem:[#allocation8 + $0x150] sm:$0xff]
    %v547 = vld [vmem:[#allocation8 + $0x158] sm:$0xff]
    %v548 = vld [vmem:[#allocation8 + $0x160] sm:$0xff]
    %v549 = vld [vmem:[#allocation8 + $0x168] sm:$0xff]
    %v550 = vld [vmem:[#allocation8 + $0x170] sm:$0xff]
    %v551 = vld [vmem:[#allocation8 + $0x178] sm:$0xff]
    %v552 = vld [vmem:[#allocation8 + $0x180] sm:$0xff]
    %v553 = vld [vmem:[#allocation8 + $0x188] sm:$0xff]
    %v554 = vld [vmem:[#allocation8 + $0x190] sm:$0xff]
    %v555 = vld [vmem:[#allocation8 + $0x198] sm:$0xff]
    %v556 = vld [vmem:[#allocation8 + $0x1a0] sm:$0xff]
    %v557 = vld [vmem:[#allocation8 + $0x1a8] sm:$0xff]
    %v558 = vld [vmem:[#allocation8 + $0x1b0] sm:$0xff]
    %v559 = vld [vmem:[#allocation8 + $0x1b8] sm:$0xff]
    %v560 = vld [vmem:[#allocation8 + $0x1c0] sm:$0xff]
    %v561 = vld [vmem:[#allocation8 + $0x1c8] sm:$0xff]
    %v562 = vld [vmem:[#allocation8 + $0x1d0] sm:$0xff]
    %v563 = vld [vmem:[#allocation8 + $0x1d8] sm:$0xff]
    %v564 = vld [vmem:[#allocation8 + $0x1e0] sm:$0xff]
    %v565 = vld [vmem:[#allocation8 + $0x1e8] sm:$0xff]
    %v566 = vld [vmem:[#allocation8 + $0x1f0] sm:$0xff]
    %v567 = vld [vmem:[#allocation8 + $0x1f8] sm:$0xff]
    %v568 = vld [vmem:[%s8] sm:$0xf]
    %v570 = vlaneseq
    %v571 = vshrl.u32 %v570, 7
    %v572 = vsub.s32 0, %v571
    %v573 = vrot.slane %v568, %v572
    %v574 = vlaneseq
    %v575 = vshrl.u32 %v574, 7
    %v576 = vsub.s32 1, %v575
    %v577 = vrot.slane %v568, %v576
    %v578 = vlaneseq
    %v579 = vshrl.u32 %v578, 7
    %v580 = vsub.s32 2, %v579
    %v581 = vrot.slane %v568, %v580
    %v582 = vlaneseq
    %v583 = vshrl.u32 %v582, 7
    %v584 = vsub.s32 3, %v583
    %v585 = vrot.slane %v568, %v584
    %v654 = vunpack.c.l.b16 %v504
    %v655 = vunpack.c.h.b16 %v504
    %v656 = vunpack.c.l.b16 %v505
    %v657 = vunpack.c.h.b16 %v505
    %v658 = vunpack.c.l.b16 %v506
    %v659 = vunpack.c.h.b16 %v506
    %v660 = vunpack.c.l.b16 %v507
    %v661 = vunpack.c.h.b16 %v507
    %v662 = vunpack.c.l.b16 %v508
    %v663 = vunpack.c.h.b16 %v508
    %v664 = vunpack.c.l.b16 %v509
    %v665 = vunpack.c.h.b16 %v509
    %v666 = vunpack.c.l.b16 %v510
    %v667 = vunpack.c.h.b16 %v510
    %v668 = vunpack.c.l.b16 %v511
    %v669 = vunpack.c.h.b16 %v511
    %v670 = vunpack.c.l.b16 %v512
    %v671 = vunpack.c.h.b16 %v512
    %v672 = vunpack.c.l.b16 %v513
    %v673 = vunpack.c.h.b16 %v513
    %v674 = vunpack.c.l.b16 %v514
    %v675 = vunpack.c.h.b16 %v514
    %v676 = vunpack.c.l.b16 %v515
    %v677 = vunpack.c.h.b16 %v515
    %v678 = vunpack.c.l.b16 %v516
    %v679 = vunpack.c.h.b16 %v516
    %v680 = vunpack.c.l.b16 %v517
    %v681 = vunpack.c.h.b16 %v517
    %v682 = vunpack.c.l.b16 %v518
    %v683 = vunpack.c.h.b16 %v518
    %v684 = vunpack.c.l.b16 %v519
    %v685 = vunpack.c.h.b16 %v519
    %v686 = vunpack.c.l.b16 %v520
    %v687 = vunpack.c.h.b16 %v520
    %v688 = vunpack.c.l.b16 %v521
    %v689 = vunpack.c.h.b16 %v521
    %v690 = vunpack.c.l.b16 %v522
    %v691 = vunpack.c.h.b16 %v522
    %v692 = vunpack.c.l.b16 %v523
    %v693 = vunpack.c.h.b16 %v523
    %v694 = vunpack.c.l.b16 %v524
    %v695 = vunpack.c.h.b16 %v524
    %v696 = vunpack.c.l.b16 %v525
    %v697 = vunpack.c.h.b16 %v525
    %v698 = vunpack.c.l.b16 %v526
    %v699 = vunpack.c.h.b16 %v526
    %v700 = vunpack.c.l.b16 %v527
    %v701 = vunpack.c.h.b16 %v527
    %v702 = vunpack.c.l.b16 %v528
    %v703 = vunpack.c.h.b16 %v528
    %v704 = vunpack.c.l.b16 %v529
    %v705 = vunpack.c.h.b16 %v529
    %v706 = vunpack.c.l.b16 %v530
    %v707 = vunpack.c.h.b16 %v530
    %v708 = vunpack.c.l.b16 %v531
    %v709 = vunpack.c.h.b16 %v531
    %v710 = vunpack.c.l.b16 %v532
    %v711 = vunpack.c.h.b16 %v532
    %v712 = vunpack.c.l.b16 %v533
    %v713 = vunpack.c.h.b16 %v533
    %v714 = vunpack.c.l.b16 %v534
    %v715 = vunpack.c.h.b16 %v534
    %v716 = vunpack.c.l.b16 %v535
    %v717 = vunpack.c.h.b16 %v535
    %v718 = vunpack.c.l.b16 %v536
    %v719 = vunpack.c.h.b16 %v536
    %v720 = vunpack.c.l.b16 %v537
    %v721 = vunpack.c.h.b16 %v537
    %v722 = vunpack.c.l.b16 %v538
    %v723 = vunpack.c.h.b16 %v538
    %v724 = vunpack.c.l.b16 %v539
    %v725 = vunpack.c.h.b16 %v539
    %v726 = vunpack.c.l.b16 %v540
    %v727 = vunpack.c.h.b16 %v540
    %v728 = vunpack.c.l.b16 %v541
    %v729 = vunpack.c.h.b16 %v541
    %v730 = vunpack.c.l.b16 %v542
    %v731 = vunpack.c.h.b16 %v542
    %v732 = vunpack.c.l.b16 %v543
    %v733 = vunpack.c.h.b16 %v543
    %v734 = vunpack.c.l.b16 %v544
    %v735 = vunpack.c.h.b16 %v544
    %v736 = vunpack.c.l.b16 %v545
    %v737 = vunpack.c.h.b16 %v545
    %v738 = vunpack.c.l.b16 %v546
    %v739 = vunpack.c.h.b16 %v546
    %v740 = vunpack.c.l.b16 %v547
    %v741 = vunpack.c.h.b16 %v547
    %v742 = vunpack.c.l.b16 %v548
    %v743 = vunpack.c.h.b16 %v548
    %v744 = vunpack.c.l.b16 %v549
    %v745 = vunpack.c.h.b16 %v549
    %v746 = vunpack.c.l.b16 %v550
    %v747 = vunpack.c.h.b16 %v550
    %v748 = vunpack.c.l.b16 %v551
    %v749 = vunpack.c.h.b16 %v551
    %v750 = vunpack.c.l.b16 %v552
    %v751 = vunpack.c.h.b16 %v552
    %v752 = vunpack.c.l.b16 %v553
    %v753 = vunpack.c.h.b16 %v553
    %v754 = vunpack.c.l.b16 %v554
    %v755 = vunpack.c.h.b16 %v554
    %v756 = vunpack.c.l.b16 %v555
    %v757 = vunpack.c.h.b16 %v555
    %v758 = vunpack.c.l.b16 %v556
    %v759 = vunpack.c.h.b16 %v556
    %v760 = vunpack.c.l.b16 %v557
    %v761 = vunpack.c.h.b16 %v557
    %v762 = vunpack.c.l.b16 %v558
    %v763 = vunpack.c.h.b16 %v558
    %v764 = vunpack.c.l.b16 %v559
    %v765 = vunpack.c.h.b16 %v559
    %v766 = vunpack.c.l.b16 %v560
    %v767 = vunpack.c.h.b16 %v560
    %v768 = vunpack.c.l.b16 %v561
    %v769 = vunpack.c.h.b16 %v561
    %v770 = vunpack.c.l.b16 %v562
    %v771 = vunpack.c.h.b16 %v562
    %v772 = vunpack.c.l.b16 %v563
    %v773 = vunpack.c.h.b16 %v563
    %v774 = vunpack.c.l.b16 %v564
    %v775 = vunpack.c.h.b16 %v564
    %v776 = vunpack.c.l.b16 %v565
    %v777 = vunpack.c.h.b16 %v565
    %v778 = vunpack.c.l.b16 %v566
    %v779 = vunpack.c.h.b16 %v566
    %v780 = vunpack.c.l.b16 %v567
    %v781 = vunpack.c.h.b16 %v567
    %v782 = vpack.c.b16 %v658, %v654
    %v783 = vpack.c.b16 %v659, %v655
    %v784 = vpack.c.b16 %v660, %v656
    %v785 = vpack.c.b16 %v661, %v657
    %v786 = vpack.c.b16 %v666, %v662
    %v787 = vpack.c.b16 %v667, %v663
    %v788 = vpack.c.b16 %v668, %v664
    %v789 = vpack.c.b16 %v669, %v665
    %v790 = vpack.c.b16 %v674, %v670
    %v791 = vpack.c.b16 %v675, %v671
    %v792 = vpack.c.b16 %v676, %v672
    %v793 = vpack.c.b16 %v677, %v673
    %v794 = vpack.c.b16 %v682, %v678
    %v795 = vpack.c.b16 %v683, %v679
    %v796 = vpack.c.b16 %v684, %v680
    %v797 = vpack.c.b16 %v685, %v681
    %v798 = vpack.c.b16 %v690, %v686
    %v799 = vpack.c.b16 %v691, %v687
    %v800 = vpack.c.b16 %v692, %v688
    %v801 = vpack.c.b16 %v693, %v689
    %v802 = vpack.c.b16 %v698, %v694
    %v803 = vpack.c.b16 %v699, %v695
    %v804 = vpack.c.b16 %v700, %v696
    %v805 = vpack.c.b16 %v701, %v697
    %v806 = vpack.c.b16 %v706, %v702
    %v807 = vpack.c.b16 %v707, %v703
    %v808 = vpack.c.b16 %v708, %v704
    %v809 = vpack.c.b16 %v709, %v705
    %v810 = vpack.c.b16 %v714, %v710
    %v811 = vpack.c.b16 %v715, %v711
    %v812 = vpack.c.b16 %v716, %v712
    %v813 = vpack.c.b16 %v717, %v713
    %v814 = vpack.c.b16 %v722, %v718
    %v815 = vpack.c.b16 %v723, %v719
    %v816 = vpack.c.b16 %v724, %v720
    %v817 = vpack.c.b16 %v725, %v721
    %v818 = vpack.c.b16 %v730, %v726
    %v819 = vpack.c.b16 %v731, %v727
    %v820 = vpack.c.b16 %v732, %v728
    %v821 = vpack.c.b16 %v733, %v729
    %v822 = vpack.c.b16 %v738, %v734
    %v823 = vpack.c.b16 %v739, %v735
    %v824 = vpack.c.b16 %v740, %v736
    %v825 = vpack.c.b16 %v741, %v737
    %v826 = vpack.c.b16 %v746, %v742
    %v827 = vpack.c.b16 %v747, %v743
    %v828 = vpack.c.b16 %v748, %v744
    %v829 = vpack.c.b16 %v749, %v745
    %v830 = vpack.c.b16 %v754, %v750
    %v831 = vpack.c.b16 %v755, %v751
    %v832 = vpack.c.b16 %v756, %v752
    %v833 = vpack.c.b16 %v757, %v753
    %v834 = vpack.c.b16 %v762, %v758
    %v835 = vpack.c.b16 %v763, %v759
    %v836 = vpack.c.b16 %v764, %v760
    %v837 = vpack.c.b16 %v765, %v761
    %v838 = vpack.c.b16 %v770, %v766
    %v839 = vpack.c.b16 %v771, %v767
    %v840 = vpack.c.b16 %v772, %v768
    %v841 = vpack.c.b16 %v773, %v769
    %v842 = vpack.c.b16 %v778, %v774
    %v843 = vpack.c.b16 %v779, %v775
    %v844 = vpack.c.b16 %v780, %v776
    %v845 = vpack.c.b16 %v781, %v777
    %910 = vmatprep.subr.bf16.mxu0 %v783
    %911 = vmatpush1.bf16.msra.mxu0 %v782
    %912 = vmatprep.subr.bf16.mxu0 %v787
    %913 = vmatpush1.bf16.msra.mxu0 %v786
    %914 = vmatprep.subr.bf16.mxu0 %v791
    %915 = vmatpush1.bf16.msra.mxu0 %v790
    %916 = vmatprep.subr.bf16.mxu0 %v795
    %917 = vmatpush1.bf16.msra.mxu0 %v794
    %918 = vmatprep.subr.bf16.mxu0 %v799
    %919 = vmatpush1.bf16.msra.mxu0 %v798
    %920 = vmatprep.subr.bf16.mxu0 %v803
    %921 = vmatpush1.bf16.msra.mxu0 %v802
    %922 = vmatprep.subr.bf16.mxu0 %v807
    %923 = vmatpush1.bf16.msra.mxu0 %v806
    %924 = vmatprep.subr.bf16.mxu0 %v811
    %925 = vmatpush1.bf16.msra.mxu0 %v810
    %926 = vmatprep.subr.bf16.mxu0 %v815
    %927 = vmatpush1.bf16.msra.mxu0 %v814
    %928 = vmatprep.subr.bf16.mxu0 %v819
    %929 = vmatpush1.bf16.msra.mxu0 %v818
    %930 = vmatprep.subr.bf16.mxu0 %v823
    %931 = vmatpush1.bf16.msra.mxu0 %v822
    %932 = vmatprep.subr.bf16.mxu0 %v827
    %933 = vmatpush1.bf16.msra.mxu0 %v826
    %934 = vmatprep.subr.bf16.mxu0 %v831
    %935 = vmatpush1.bf16.msra.mxu0 %v830
    %936 = vmatprep.subr.bf16.mxu0 %v835
    %937 = vmatpush1.bf16.msra.mxu0 %v834
    %938 = vmatprep.subr.bf16.mxu0 %v839
    %939 = vmatpush1.bf16.msra.mxu0 %v838
    %940 = vmatprep.subr.bf16.mxu0 %v843
    %941 = vmatpush1.bf16.msra.mxu0 %v842
    %942 = vmatprep.mubr.bf16.mxu0 %v503
    %943 = vmatmul.mubr.bf16.gmra.mrb[0].mxu0 %v502
    %v944 = vpop.f32.mrb[0].mxu0
    %v945 = vadd.f32 %v573, %v944
    %v946 = vpop.f32.mrb[0].mxu0
    %v947 = vadd.f32 %v577, %v946
    %v948 = vpop.f32.mrb[0].mxu0
    %v949 = vpop.f32.mrb[0].mxu0
    %950 = vdwg.mxu0
    %951 = vmatprep.subr.bf16.mxu0 %v785
    %952 = vmatpush1.bf16.msra.mxu0 %v784
    %953 = vmatprep.subr.bf16.mxu0 %v789
    %954 = vmatpush1.bf16.msra.mxu0 %v788
    %955 = vmatprep.subr.bf16.mxu0 %v793
    %956 = vmatpush1.bf16.msra.mxu0 %v792
    %957 = vmatprep.subr.bf16.mxu0 %v797
    %958 = vmatpush1.bf16.msra.mxu0 %v796
    %959 = vmatprep.subr.bf16.mxu0 %v801
    %960 = vmatpush1.bf16.msra.mxu0 %v800
    %961 = vmatprep.subr.bf16.mxu0 %v805
    %962 = vmatpush1.bf16.msra.mxu0 %v804
    %963 = vmatprep.subr.bf16.mxu0 %v809
    %964 = vmatpush1.bf16.msra.mxu0 %v808
    %965 = vmatprep.subr.bf16.mxu0 %v813
    %966 = vmatpush1.bf16.msra.mxu0 %v812
    %967 = vmatprep.subr.bf16.mxu0 %v817
    %968 = vmatpush1.bf16.msra.mxu0 %v816
    %969 = vmatprep.subr.bf16.mxu0 %v821
    %970 = vmatpush1.bf16.msra.mxu0 %v820
    %971 = vmatprep.subr.bf16.mxu0 %v825
    %972 = vmatpush1.bf16.msra.mxu0 %v824
    %973 = vmatprep.subr.bf16.mxu0 %v829
    %974 = vmatpush1.bf16.msra.mxu0 %v828
    %975 = vmatprep.subr.bf16.mxu0 %v833
    %976 = vmatpush1.bf16.msra.mxu0 %v832
    %977 = vmatprep.subr.bf16.mxu0 %v837
    %978 = vmatpush1.bf16.msra.mxu0 %v836
    %979 = vmatprep.subr.bf16.mxu0 %v841
    %980 = vmatpush1.bf16.msra.mxu0 %v840
    %981 = vmatprep.subr.bf16.mxu0 %v845
    %982 = vmatpush1.bf16.msra.mxu0 %v844
    %983 = vmatprep.mubr.bf16.mxu0 %v503
    %984 = vmatmul.mubr.bf16.gmra.mrb[0].mxu0 %v502
    %v985 = vpop.f32.mrb[0].mxu0
    %v986 = vadd.f32 %v581, %v985
    %v987 = vpop.f32.mrb[0].mxu0
    %v988 = vadd.f32 %v585, %v987
    %v989 = vpop.f32.mrb[0].mxu0
    %v990 = vpop.f32.mrb[0].mxu0
    %991 = vdwg.mxu0
    %vm992 = vcmp.gt.f32.partialorder %v945, 0.0
    %vm993 = vcmp.gt.f32.partialorder %v947, 0.0
    %vm994 = vcmp.gt.f32.partialorder %v986, 0.0
    %vm995 = vcmp.gt.f32.partialorder %v988, 0.0
    %v996 = vmul.f32 %v945, 0.2
    %v997 = vmul.f32 %v947, 0.2
    %v998 = vmul.f32 %v986, 0.2
    %v999 = vmul.f32 %v988, 0.2
    %v1000 = vsel %vm992, %v945, %v996
    %v1001 = vsel %vm993, %v947, %v997
    %v1002 = vsel %vm994, %v986, %v998
    %v1003 = vsel %vm995, %v988, %v999
    %v1004 = vpack.c.bf16 %v1000, %v1000
    %v1005 = vpack.c.bf16 %v1001, %v1001
    %v1006 = vpack.c.bf16 %v1002, %v1002
    %v1007 = vpack.c.bf16 %v1003, %v1003
    %v1008 = vld [vmem:[#allocation10] sm:$0xf]
    %v1009 = vld [vmem:[#allocation10 + $0x4] sm:$0xf]
    %v1010 = vld [vmem:[#allocation10 + $0x8] sm:$0xf]
    %v1011 = vld [vmem:[#allocation10 + $0xc] sm:$0xf]
    %v1012 = vld [vmem:[#allocation10 + $0x10] sm:$0xf]
    %v1013 = vld [vmem:[#allocation10 + $0x14] sm:$0xf]
    %v1014 = vld [vmem:[#allocation10 + $0x18] sm:$0xf]
    %v1015 = vld [vmem:[#allocation10 + $0x1c] sm:$0xf]
    %v1016 = vld [vmem:[#allocation10 + $0x20] sm:$0xf]
    %v1017 = vld [vmem:[#allocation10 + $0x24] sm:$0xf]
    %v1018 = vld [vmem:[#allocation10 + $0x28] sm:$0xf]
    %v1019 = vld [vmem:[#allocation10 + $0x2c] sm:$0xf]
    %v1020 = vld [vmem:[#allocation10 + $0x30] sm:$0xf]
    %v1021 = vld [vmem:[#allocation10 + $0x34] sm:$0xf]
    %v1022 = vld [vmem:[#allocation10 + $0x38] sm:$0xf]
    %v1023 = vld [vmem:[#allocation10 + $0x3c] sm:$0xf]
    %v1024 = vld [vmem:[#allocation10 + $0x40] sm:$0xf]
    %v1025 = vld [vmem:[#allocation10 + $0x44] sm:$0xf]
    %v1026 = vld [vmem:[#allocation10 + $0x48] sm:$0xf]
    %v1027 = vld [vmem:[#allocation10 + $0x4c] sm:$0xf]
    %v1028 = vld [vmem:[#allocation10 + $0x50] sm:$0xf]
    %v1029 = vld [vmem:[#allocation10 + $0x54] sm:$0xf]
    %v1030 = vld [vmem:[#allocation10 + $0x58] sm:$0xf]
    %v1031 = vld [vmem:[#allocation10 + $0x5c] sm:$0xf]
    %v1032 = vld [vmem:[#allocation10 + $0x60] sm:$0xf]
    %v1033 = vld [vmem:[#allocation10 + $0x64] sm:$0xf]
    %v1034 = vld [vmem:[#allocation10 + $0x68] sm:$0xf]
    %v1035 = vld [vmem:[#allocation10 + $0x6c] sm:$0xf]
    %v1036 = vld [vmem:[#allocation10 + $0x70] sm:$0xf]
    %v1037 = vld [vmem:[#allocation10 + $0x74] sm:$0xf]
    %v1038 = vld [vmem:[#allocation10 + $0x78] sm:$0xf]
    %v1039 = vld [vmem:[#allocation10 + $0x7c] sm:$0xf]
    %v1040 = vld [vmem:[#allocation10 + $0x80] sm:$0xf]
    %v1041 = vld [vmem:[#allocation10 + $0x84] sm:$0xf]
    %v1042 = vld [vmem:[#allocation10 + $0x88] sm:$0xf]
    %v1043 = vld [vmem:[#allocation10 + $0x8c] sm:$0xf]
    %v1044 = vld [vmem:[#allocation10 + $0x90] sm:$0xf]
    %v1045 = vld [vmem:[#allocation10 + $0x94] sm:$0xf]
    %v1046 = vld [vmem:[#allocation10 + $0x98] sm:$0xf]
    %v1047 = vld [vmem:[#allocation10 + $0x9c] sm:$0xf]
    %v1048 = vld [vmem:[#allocation10 + $0xa0] sm:$0xf]
    %v1049 = vld [vmem:[#allocation10 + $0xa4] sm:$0xf]
    %v1050 = vld [vmem:[#allocation10 + $0xa8] sm:$0xf]
    %v1051 = vld [vmem:[#allocation10 + $0xac] sm:$0xf]
    %v1052 = vld [vmem:[#allocation10 + $0xb0] sm:$0xf]
    %v1053 = vld [vmem:[#allocation10 + $0xb4] sm:$0xf]
    %v1054 = vld [vmem:[#allocation10 + $0xb8] sm:$0xf]
    %v1055 = vld [vmem:[#allocation10 + $0xbc] sm:$0xf]
    %v1056 = vld [vmem:[#allocation10 + $0xc0] sm:$0xf]
    %v1057 = vld [vmem:[#allocation10 + $0xc4] sm:$0xf]
    %v1058 = vld [vmem:[#allocation10 + $0xc8] sm:$0xf]
    %v1059 = vld [vmem:[#allocation10 + $0xcc] sm:$0xf]
    %v1060 = vld [vmem:[#allocation10 + $0xd0] sm:$0xf]
    %v1061 = vld [vmem:[#allocation10 + $0xd4] sm:$0xf]
    %v1062 = vld [vmem:[#allocation10 + $0xd8] sm:$0xf]
    %v1063 = vld [vmem:[#allocation10 + $0xdc] sm:$0xf]
    %v1064 = vld [vmem:[#allocation10 + $0xe0] sm:$0xf]
    %v1065 = vld [vmem:[#allocation10 + $0xe4] sm:$0xf]
    %v1066 = vld [vmem:[#allocation10 + $0xe8] sm:$0xf]
    %v1067 = vld [vmem:[#allocation10 + $0xec] sm:$0xf]
    %v1068 = vld [vmem:[#allocation10 + $0xf0] sm:$0xf]
    %v1069 = vld [vmem:[#allocation10 + $0xf4] sm:$0xf]
    %v1070 = vld [vmem:[#allocation10 + $0xf8] sm:$0xf]
    %v1071 = vld [vmem:[#allocation10 + $0xfc] sm:$0xf]
    %v1072 = vld [vmem:[%s10] sm:$0x1]
    %v1074 = vlaneseq
    %v1075 = vshrl.u32 %v1074, 7
    %v1076 = vsub.s32 0, %v1075
    %v1077 = vrot.slane %v1072, %v1076
    %v1143 = vunpack.c.l.b16 %v1008
    %v1144 = vunpack.c.l.b16 %v1009
    %v1145 = vunpack.c.l.b16 %v1010
    %v1146 = vunpack.c.l.b16 %v1011
    %v1147 = vunpack.c.l.b16 %v1012
    %v1148 = vunpack.c.l.b16 %v1013
    %v1149 = vunpack.c.l.b16 %v1014
    %v1150 = vunpack.c.l.b16 %v1015
    %v1151 = vunpack.c.l.b16 %v1016
    %v1152 = vunpack.c.l.b16 %v1017
    %v1153 = vunpack.c.l.b16 %v1018
    %v1154 = vunpack.c.l.b16 %v1019
    %v1155 = vunpack.c.l.b16 %v1020
    %v1156 = vunpack.c.l.b16 %v1021
    %v1157 = vunpack.c.l.b16 %v1022
    %v1158 = vunpack.c.l.b16 %v1023
    %v1159 = vunpack.c.l.b16 %v1024
    %v1160 = vunpack.c.l.b16 %v1025
    %v1161 = vunpack.c.l.b16 %v1026
    %v1162 = vunpack.c.l.b16 %v1027
    %v1163 = vunpack.c.l.b16 %v1028
    %v1164 = vunpack.c.l.b16 %v1029
    %v1165 = vunpack.c.l.b16 %v1030
    %v1166 = vunpack.c.l.b16 %v1031
    %v1167 = vunpack.c.l.b16 %v1032
    %v1168 = vunpack.c.l.b16 %v1033
    %v1169 = vunpack.c.l.b16 %v1034
    %v1170 = vunpack.c.l.b16 %v1035
    %v1171 = vunpack.c.l.b16 %v1036
    %v1172 = vunpack.c.l.b16 %v1037
    %v1173 = vunpack.c.l.b16 %v1038
    %v1174 = vunpack.c.l.b16 %v1039
    %v1175 = vunpack.c.l.b16 %v1040
    %v1176 = vunpack.c.l.b16 %v1041
    %v1177 = vunpack.c.l.b16 %v1042
    %v1178 = vunpack.c.l.b16 %v1043
    %v1179 = vunpack.c.l.b16 %v1044
    %v1180 = vunpack.c.l.b16 %v1045
    %v1181 = vunpack.c.l.b16 %v1046
    %v1182 = vunpack.c.l.b16 %v1047
    %v1183 = vunpack.c.l.b16 %v1048
    %v1184 = vunpack.c.l.b16 %v1049
    %v1185 = vunpack.c.l.b16 %v1050
    %v1186 = vunpack.c.l.b16 %v1051
    %v1187 = vunpack.c.l.b16 %v1052
    %v1188 = vunpack.c.l.b16 %v1053
    %v1189 = vunpack.c.l.b16 %v1054
    %v1190 = vunpack.c.l.b16 %v1055
    %v1191 = vunpack.c.l.b16 %v1056
    %v1192 = vunpack.c.l.b16 %v1057
    %v1193 = vunpack.c.l.b16 %v1058
    %v1194 = vunpack.c.l.b16 %v1059
    %v1195 = vunpack.c.l.b16 %v1060
    %v1196 = vunpack.c.l.b16 %v1061
    %v1197 = vunpack.c.l.b16 %v1062
    %v1198 = vunpack.c.l.b16 %v1063
    %v1199 = vunpack.c.l.b16 %v1064
    %v1200 = vunpack.c.l.b16 %v1065
    %v1201 = vunpack.c.l.b16 %v1066
    %v1202 = vunpack.c.l.b16 %v1067
    %v1203 = vunpack.c.l.b16 %v1068
    %v1204 = vunpack.c.l.b16 %v1069
    %v1205 = vunpack.c.l.b16 %v1070
    %v1206 = vunpack.c.l.b16 %v1071
    %v1207 = vpack.c.b16 %v1144, %v1143
    %v1208 = vpack.c.b16 %v1146, %v1145
    %v1209 = vpack.c.b16 %v1148, %v1147
    %v1210 = vpack.c.b16 %v1150, %v1149
    %v1211 = vpack.c.b16 %v1152, %v1151
    %v1212 = vpack.c.b16 %v1154, %v1153
    %v1213 = vpack.c.b16 %v1156, %v1155
    %v1214 = vpack.c.b16 %v1158, %v1157
    %v1215 = vpack.c.b16 %v1160, %v1159
    %v1216 = vpack.c.b16 %v1162, %v1161
    %v1217 = vpack.c.b16 %v1164, %v1163
    %v1218 = vpack.c.b16 %v1166, %v1165
    %v1219 = vpack.c.b16 %v1168, %v1167
    %v1220 = vpack.c.b16 %v1170, %v1169
    %v1221 = vpack.c.b16 %v1172, %v1171
    %v1222 = vpack.c.b16 %v1174, %v1173
    %v1223 = vpack.c.b16 %v1176, %v1175
    %v1224 = vpack.c.b16 %v1178, %v1177
    %v1225 = vpack.c.b16 %v1180, %v1179
    %v1226 = vpack.c.b16 %v1182, %v1181
    %v1227 = vpack.c.b16 %v1184, %v1183
    %v1228 = vpack.c.b16 %v1186, %v1185
    %v1229 = vpack.c.b16 %v1188, %v1187
    %v1230 = vpack.c.b16 %v1190, %v1189
    %v1231 = vpack.c.b16 %v1192, %v1191
    %v1232 = vpack.c.b16 %v1194, %v1193
    %v1233 = vpack.c.b16 %v1196, %v1195
    %v1234 = vpack.c.b16 %v1198, %v1197
    %v1235 = vpack.c.b16 %v1200, %v1199
    %v1236 = vpack.c.b16 %v1202, %v1201
    %v1237 = vpack.c.b16 %v1204, %v1203
    %v1238 = vpack.c.b16 %v1206, %v1205
    %1271 = vmatprep.subr.bf16.mxu0 0
    %1272 = vmatpush1.bf16.msra.mxu0 %v1207
    %1273 = vmatprep.subr.bf16.mxu0 0
    %1274 = vmatpush1.bf16.msra.mxu0 %v1208
    %1275 = vmatprep.subr.bf16.mxu0 0
    %1276 = vmatpush1.bf16.msra.mxu0 %v1209
    %1277 = vmatprep.subr.bf16.mxu0 0
    %1278 = vmatpush1.bf16.msra.mxu0 %v1210
    %1279 = vmatprep.subr.bf16.mxu0 0
    %1280 = vmatpush1.bf16.msra.mxu0 %v1211
    %1281 = vmatprep.subr.bf16.mxu0 0
    %1282 = vmatpush1.bf16.msra.mxu0 %v1212
    %1283 = vmatprep.subr.bf16.mxu0 0
    %1284 = vmatpush1.bf16.msra.mxu0 %v1213
    %1285 = vmatprep.subr.bf16.mxu0 0
    %1286 = vmatpush1.bf16.msra.mxu0 %v1214
    %1287 = vmatprep.subr.bf16.mxu0 0
    %1288 = vmatpush1.bf16.msra.mxu0 %v1215
    %1289 = vmatprep.subr.bf16.mxu0 0
    %1290 = vmatpush1.bf16.msra.mxu0 %v1216
    %1291 = vmatprep.subr.bf16.mxu0 0
    %1292 = vmatpush1.bf16.msra.mxu0 %v1217
    %1293 = vmatprep.subr.bf16.mxu0 0
    %1294 = vmatpush1.bf16.msra.mxu0 %v1218
    %1295 = vmatprep.subr.bf16.mxu0 0
    %1296 = vmatpush1.bf16.msra.mxu0 %v1219
    %1297 = vmatprep.subr.bf16.mxu0 0
    %1298 = vmatpush1.bf16.msra.mxu0 %v1220
    %1299 = vmatprep.subr.bf16.mxu0 0
    %1300 = vmatpush1.bf16.msra.mxu0 %v1221
    %1301 = vmatprep.subr.bf16.mxu0 0
    %1302 = vmatpush1.bf16.msra.mxu0 %v1222
    %1303 = vmatprep.mubr.bf16.mxu0 %v1005
    %1304 = vmatmul.mubr.bf16.gmra.mrb[0].mxu0 %v1004
    %v1305 = vpop.f32.mrb[0].mxu0
    %v1306 = vadd.f32 %v1077, %v1305
    %v1307 = vpop.f32.mrb[0].mxu0
    %v1308 = vpop.f32.mrb[0].mxu0
    %v1309 = vpop.f32.mrb[0].mxu0
    %1310 = vdwg.mxu0
    %1311 = vmatprep.subr.bf16.mxu0 0
    %1312 = vmatpush1.bf16.msra.mxu0 %v1223
    %1313 = vmatprep.subr.bf16.mxu0 0
    %1314 = vmatpush1.bf16.msra.mxu0 %v1224
    %1315 = vmatprep.subr.bf16.mxu0 0
    %1316 = vmatpush1.bf16.msra.mxu0 %v1225
    %1317 = vmatprep.subr.bf16.mxu0 0
    %1318 = vmatpush1.bf16.msra.mxu0 %v1226
    %1319 = vmatprep.subr.bf16.mxu0 0
    %1320 = vmatpush1.bf16.msra.mxu0 %v1227
    %1321 = vmatprep.subr.bf16.mxu0 0
    %1322 = vmatpush1.bf16.msra.mxu0 %v1228
    %1323 = vmatprep.subr.bf16.mxu0 0
    %1324 = vmatpush1.bf16.msra.mxu0 %v1229
    %1325 = vmatprep.subr.bf16.mxu0 0
    %1326 = vmatpush1.bf16.msra.mxu0 %v1230
    %1327 = vmatprep.subr.bf16.mxu0 0
    %1328 = vmatpush1.bf16.msra.mxu0 %v1231
    %1329 = vmatprep.subr.bf16.mxu0 0
    %1330 = vmatpush1.bf16.msra.mxu0 %v1232
    %1331 = vmatprep.subr.bf16.mxu0 0
    %1332 = vmatpush1.bf16.msra.mxu0 %v1233
    %1333 = vmatprep.subr.bf16.mxu0 0
    %1334 = vmatpush1.bf16.msra.mxu0 %v1234
    %1335 = vmatprep.subr.bf16.mxu0 0
    %1336 = vmatpush1.bf16.msra.mxu0 %v1235
    %1337 = vmatprep.subr.bf16.mxu0 0
    %1338 = vmatpush1.bf16.msra.mxu0 %v1236
    %1339 = vmatprep.subr.bf16.mxu0 0
    %1340 = vmatpush1.bf16.msra.mxu0 %v1237
    %1341 = vmatprep.subr.bf16.mxu0 0
    %1342 = vmatpush1.bf16.msra.mxu0 %v1238
    %1343 = vmatprep.mubr.bf16.mxu0 %v1007
    %1344 = vmatmul.mubr.bf16.gmra.mrb[0].mxu0 %v1006
    %v1345 = vpop.f32.mrb[0].mxu0
    %v1346 = vadd.f32 %v1306, %v1345
    %v1347 = vpop.f32.mrb[0].mxu0
    %v1348 = vpop.f32.mrb[0].mxu0
    %v1349 = vpop.f32.mrb[0].mxu0
    %1350 = vdwg.mxu0
    %1351 = vst [vmem:[#allocation11] sm:$0xff] %v1346
    // Predicated region
    $region66: #{tpu_custom_call.1} parent=1 // pred_check
      _
    $region67: #{tpu_custom_call.1} parent=1 // pred_check_branch
      %1353 = sbr.rel (0) target = $region69
    $region68: #{tpu_custom_call.1} parent=1 // pred_region
      %s1355 = ssub.s32 128, 128
      %1356 = vsyncadd [#allocation4], %s1355
      %s1358 = sshll.u32 [#allocation11], 4
      %s1359 = int_to_ptr.vmem [resolvable:$true] %s1358
      %1361 = dma.vmem_to_hbm [thread:$0]  %s1359, 128, %s11, [#allocation4]
    $region69: #{tpu_custom_call.1} parent=1 // pred_fallthru
      _
    // Predicated region
    $region70: #{tpu_custom_call.1} parent=1 // pred_check
      _
    $region71: #{tpu_custom_call.1} parent=1 // pred_check_branch
      %1363 = sbr.rel (0) target = $region73
    $region72: #{tpu_custom_call.1} parent=1 // pred_region
      %1364 = dma.done [#allocation4], 128
    $region73: #{tpu_custom_call.1} parent=1 // pred_fallthru
      _
    %1365 = vsyncpa [#allocation3], 1
    %1366 = vsyncpa [#allocation6], 1
    %1367 = vsyncpa [#allocation9], 1
    %1368 = vsyncpa [#allocation4], 1

</llo_original>
